<compile_context>
chip_gen: v7x
topology: tpu7x:2x2x1
jax: 0.10.0
libtpu: 0.0.40
codegen_flags: <defaults>
</compile_context>

<pallas_src>
from functools import partial

import jax
import jax.numpy as jnp
from jax.experimental import pallas as pl
from jax.experimental.pallas import tpu as pltpu


def _round_up(x, m):
    return (x + m - 1) // m * m


def _choose_tile(B, block_b):
    """Even row split; >=16 rows; 128-multiples only if they add no padding;
    >=2 grid steps for large B (dual-TC sharding on v7x)."""
    n_steps = max(1, -(-B // block_b))
    if B >= 256:
        n_steps = max(n_steps, 2)
    tb = _round_up(-(-B // n_steps), 16)
    tb128 = _round_up(tb, 128)
    if tb >= 128 and _round_up(B, tb128) <= _round_up(B, tb):
        tb = tb128
    Bp = _round_up(B, tb)
    return tb, Bp


def mlp_kernel(x_ref, w1_ref, b1_ref, w2_ref, b2_ref, o_ref):
    # Cast x to bf16 in-register (native MXU input dtype); accumulate in f32.
    x = x_ref[...].astype(jnp.bfloat16)
    # fc1: [tb, C](bf16) @ [C, H](bf16) -> f32 on the MXU.
    h = jnp.dot(x, w1_ref[...], preferred_element_type=jnp.float32)
    h = h + b1_ref[...]            # f32 bias add (VPU)
    h = jnp.maximum(h, 0.0)        # ReLU, f32 epilogue (no bf16 VPU on v5e)
    # Dropout(0.5) -> identity in eval mode.
    # fc2: [tb, H](bf16) @ [H, Kp](bf16) -> f32 accumulate.
    out = jnp.dot(h.astype(jnp.bfloat16), w2_ref[...],
                  preferred_element_type=jnp.float32)
    out = out + b2_ref[...]
    o_ref[...] = out.astype(o_ref.dtype)


def prepare_params(w1, b1, w2, b2):
    """One-time prep: bf16 weights, lane-dense (128-padded) output dim, 2-D biases."""
    C, H = w1.shape
    K = w2.shape[1]
    Kp = _round_up(K, 128)
    w1b = w1.astype(jnp.bfloat16)                                          # (C, H)
    w2p = jnp.zeros((H, Kp), jnp.bfloat16).at[:, :K].set(w2.astype(jnp.bfloat16))
    b1_2d = b1.reshape(1, H).astype(jnp.float32)
    b2_2d = jnp.zeros((1, Kp), jnp.float32).at[:, :K].set(b2.astype(jnp.float32))
    return w1b, b1_2d, w2p, b2_2d


@partial(jax.jit, static_argnames=("num_classes", "block_b"))
def gesture_classifier_forward(x, w1b, b1_2d, w2p, b2_2d, *, num_classes, block_b=512):
    """x: [B, C] f32; prepared params from prepare_params(). Returns [B, num_classes] f32."""
    B, C = x.shape
    H = w1b.shape[1]
    Kp = w2p.shape[1]

    tb, Bp = _choose_tile(B, block_b)
    # Only the batch dim is padded (cheap, fused under this jit); x stays
    # unpadded along C and f32 — cast to bf16 happens inside the kernel.
    xp = x if Bp == B else jnp.zeros((Bp, C), x.dtype).at[:B].set(x)

    out_p = pl.pallas_call(
        mlp_kernel,
        out_shape=jax.ShapeDtypeStruct((Bp, Kp), jnp.float32),
        grid=(Bp // tb,),
        in_specs=[
            pl.BlockSpec((tb, C), lambda i: (i, 0)),   # x rows tiled; C == full dim
            pl.BlockSpec((C, H), lambda i: (0, 0)),    # w1 resident (full block)
            pl.BlockSpec((1, H), lambda i: (0, 0)),    # b1 resident
            pl.BlockSpec((H, Kp), lambda i: (0, 0)),   # w2 resident
            pl.BlockSpec((1, Kp), lambda i: (0, 0)),   # b2 resident
        ],
        out_specs=pl.BlockSpec((tb, Kp), lambda i: (i, 0)),
        compiler_params=pltpu.CompilerParams(
            dimension_semantics=("parallel",),
        ),
    )(xp, w1b, b1_2d, w2p, b2_2d)
    # Slice off batch/lane padding (fused under the same jit as the kernel).
    return out_p[:B, :num_classes]


def _init_linear(key, fan_in, fan_out, dtype=jnp.float32):
    # Deterministic uniform(-1/sqrt(fan_in), 1/sqrt(fan_in)) init (PyTorch default range).
    kw, kb = jax.random.split(key)
    bound = 1.0 / (fan_in ** 0.5)
    w = jax.random.uniform(kw, (fan_in, fan_out), dtype, minval=-bound, maxval=bound)
    b = jax.random.uniform(kb, (fan_out,), dtype, minval=-bound, maxval=bound)
    return w, b


if __name__ == "__main__":
    # Small shapes consistent with the module: flat feature vector input.
    batch = 8
    input_channels = 32
    num_classes = 10
    hidden = 256  # fixed by the module definition

    key = jax.random.PRNGKey(0)
    kx, k1, k2 = jax.random.split(key, 3)

    x = jax.random.normal(kx, (batch, input_channels), jnp.float32)
    w1, b1 = _init_linear(k1, input_channels, hidden)
    w2, b2 = _init_linear(k2, hidden, num_classes)

    # One-time (hoisted) weight prep, then the jitted fused forward.
    w1b, b1_2d, w2p, b2_2d = prepare_params(w1, b1, w2, b2)
    out = gesture_classifier_forward(x, w1b, b1_2d, w2p, b2_2d,
                                     num_classes=num_classes)
    out = jax.block_until_ready(out)

    # Pure-JAX f32 reference (eval-mode forward). Tolerance loosened for bf16
    # matmul inputs (accumulation is still f32).
    h_ref = jnp.maximum(x @ w1 + b1, 0.0)
    ref = h_ref @ w2 + b2
    assert out.shape == (batch, num_classes)
    assert out.dtype == jnp.float32
    assert jnp.allclose(out, ref, atol=2e-2, rtol=2e-2), "mismatch vs reference"

    print("KERNEL_OK")
</pallas_src>

<mosaic_0001>
module attributes {stable_mosaic.version = 11 : i64} {
  func.func @mlp_kernel(%arg0: i32, %arg1: memref<16x32xf32, #tpu.memory_space<vmem>>, %arg2: memref<32x256xbf16, #tpu.memory_space<vmem>>, %arg3: memref<1x256xf32, #tpu.memory_space<vmem>>, %arg4: memref<256x128xbf16, #tpu.memory_space<vmem>>, %arg5: memref<1x128xf32, #tpu.memory_space<vmem>>, %arg6: memref<16x128xf32, #tpu.memory_space<vmem>>) attributes {dimension_semantics = [#tpu.dimension_semantics<parallel>], iteration_bounds = array<i64: 1>, scalar_prefetch = 0 : i64, scratch_operands = 0 : i64, tpu.core_type = #tpu.core_type<tc>, window_params = [{transform_indices = @transform_0, window_bounds = array<i64: 16, 32>}, {pipeline_mode = #tpu.pipeline_mode<synchronous>, transform_indices = @transform_1, window_bounds = array<i64: 32, 256>}, {pipeline_mode = #tpu.pipeline_mode<synchronous>, transform_indices = @transform_2, window_bounds = array<i64: 1, 256>}, {pipeline_mode = #tpu.pipeline_mode<synchronous>, transform_indices = @transform_3, window_bounds = array<i64: 256, 128>}, {pipeline_mode = #tpu.pipeline_mode<synchronous>, transform_indices = @transform_4, window_bounds = array<i64: 1, 128>}, {transform_indices = @transform_5, window_bounds = array<i64: 16, 128>}]} {
    %c0 = arith.constant 0 : index
    %c0_0 = arith.constant 0 : index
    %0 = vector.load %arg1[%c0, %c0_0] : memref<16x32xf32, #tpu.memory_space<vmem>>, vector<16x32xf32>
    %1 = arith.truncf %0 : vector<16x32xf32> to vector<16x32xbf16>
    %c0_1 = arith.constant 0 : index
    %c0_2 = arith.constant 0 : index
    %2 = vector.load %arg2[%c0_1, %c0_2] : memref<32x256xbf16, #tpu.memory_space<vmem>>, vector<32x256xbf16>
    %cst = arith.constant dense<0.000000e+00> : vector<16x256xf32>
    %3 = tpu.matmul %1, %2, %cst {dimension_numbers = #tpu.dot_dimension_numbers<[1], [0], [0], [1], [0, 0, 1, 1], [], []>} : vector<16x32xbf16>, vector<32x256xbf16>, vector<16x256xf32> -> vector<16x256xf32>
    %c0_3 = arith.constant 0 : index
    %c0_4 = arith.constant 0 : index
    %4 = vector.load %arg3[%c0_3, %c0_4] : memref<1x256xf32, #tpu.memory_space<vmem>>, vector<1x256xf32>
    %5 = vector.broadcast %4 : vector<1x256xf32> to vector<16x256xf32>
    %6 = arith.addf %3, %5 : vector<16x256xf32>
    %cst_5 = arith.constant 0.000000e+00 : f32
    %7 = vector.broadcast %cst_5 : f32 to vector<16x256xf32>
    %8 = arith.maximumf %6, %7 : vector<16x256xf32>
    %9 = arith.truncf %8 : vector<16x256xf32> to vector<16x256xbf16>
    %c0_6 = arith.constant 0 : index
    %c0_7 = arith.constant 0 : index
    %10 = vector.load %arg4[%c0_6, %c0_7] : memref<256x128xbf16, #tpu.memory_space<vmem>>, vector<256x128xbf16>
    %cst_8 = arith.constant dense<0.000000e+00> : vector<16x128xf32>
    %11 = tpu.matmul %9, %10, %cst_8 {dimension_numbers = #tpu.dot_dimension_numbers<[1], [0], [0], [1], [0, 0, 1, 1], [], []>} : vector<16x256xbf16>, vector<256x128xbf16>, vector<16x128xf32> -> vector<16x128xf32>
    %c0_9 = arith.constant 0 : index
    %c0_10 = arith.constant 0 : index
    %12 = vector.load %arg5[%c0_9, %c0_10] : memref<1x128xf32, #tpu.memory_space<vmem>>, vector<1x128xf32>
    %13 = vector.broadcast %12 : vector<1x128xf32> to vector<16x128xf32>
    %14 = arith.addf %11, %13 : vector<16x128xf32>
    %c0_11 = arith.constant 0 : index
    %c0_12 = arith.constant 0 : index
    %15 = vector.load %arg6[%c0_11, %c0_12] : memref<16x128xf32, #tpu.memory_space<vmem>>, vector<16x128xf32>
    tpu.vector_store %arg6[%c0_11, %c0_12], %14 {strides = array<i32>} : memref<16x128xf32, #tpu.memory_space<vmem>>, vector<16x128xf32>,
    return
  }
  func.func @transform_0(%arg0: i32) -> (i32, i32) {
    %c0_i32 = arith.constant 0 : i32
    %c0_i32_0 = arith.constant 0 : i32
    return %arg0, %c0_i32 : i32, i32
  }
  func.func @transform_1(%arg0: i32) -> (i32, i32) {
    %c0_i32 = arith.constant 0 : i32
    %c0_i32_0 = arith.constant 0 : i32
    %c0_i32_1 = arith.constant 0 : i32
    return %c0_i32, %c0_i32_0 : i32, i32
  }
  func.func @transform_2(%arg0: i32) -> (i32, i32) {
    %c0_i32 = arith.constant 0 : i32
    %c0_i32_0 = arith.constant 0 : i32
    %c0_i32_1 = arith.constant 0 : i32
    return %c0_i32, %c0_i32_0 : i32, i32
  }
  func.func @transform_3(%arg0: i32) -> (i32, i32) {
    %c0_i32 = arith.constant 0 : i32
    %c0_i32_0 = arith.constant 0 : i32
    %c0_i32_1 = arith.constant 0 : i32
    return %c0_i32, %c0_i32_0 : i32, i32
  }
  func.func @transform_4(%arg0: i32) -> (i32, i32) {
    %c0_i32 = arith.constant 0 : i32
    %c0_i32_0 = arith.constant 0 : i32
    %c0_i32_1 = arith.constant 0 : i32
    return %c0_i32, %c0_i32_0 : i32, i32
  }
  func.func @transform_5(%arg0: i32) -> (i32, i32) {
    %c0_i32 = arith.constant 0 : i32
    %c0_i32_0 = arith.constant 0 : i32
    return %arg0, %c0_i32 : i32, i32
  }
}

</mosaic_0001>

<llo_original>
// kernel: gesture_classifier_forward.1
$region0: #{gesture_classifier_forward.1}
  #allocation0 [shape = 'u32[]', space=smem, size = 0x4, offset = 0x4, fixed_abs, tag = 'smem constant byte address 0x4 - core index']
  #allocation1 [shape = 'u32[144,128]{1,0:T(1,128)}', space=vmem, size = 0x12000, scoped, tag = 'internal scratch']
  %s0 = inlined_call_operand.vmem [shape: f32[16,32], index: 0, kind: input, shape index: {}]
  %s1 = inlined_call_operand.hbm [shape: bf16[32,256], index: 1, kind: input, shape index: {}]
  %s2 = inlined_call_operand.vmem [shape: f32[1,256], index: 2, kind: input, shape index: {}]
  %s3 = inlined_call_operand.hbm [shape: bf16[256,128], index: 3, kind: input, shape index: {}]
  %s4 = inlined_call_operand.vmem [shape: f32[1,128], index: 4, kind: input, shape index: {}]
  %s5 = inlined_call_operand.vmem [shape: f32[16,128], index: 5, kind: output, shape index: {}]
  %s6 = sld [smem:[#allocation0]]
  $region38: #{gesture_classifier_forward.1} parent=0
    _
  %s8 = ssub.s32 1, %s6
  %s9 = scalar_select 0, %s8, %s6
  $region1: #{gesture_classifier_forward.1} parent=0
    #allocation2 [shape = 'u8[16384]{0}', space=vmem, size = 0x4000, scoped, tag = 'input window, operand 1, single buffered']
    #allocation3 [shape = 's32[1]{0}', space=sflag, size = 0x4, scoped, tag = 'scoped memory for gesture_classifier_forward.1']
    #allocation4 [shape = 'u8[65536]{0}', space=vmem, size = 0x10000, scoped, tag = 'input window, operand 3, single buffered']
    #allocation5 [shape = 's32[1]{0}', space=sflag, size = 0x4, scoped, tag = 'scoped memory for gesture_classifier_forward.1']
    %10 = vsyncpa [#allocation3], 0
    %11 = vsyncpa [#allocation5], 0
    // Predicated region
    $region2: #{gesture_classifier_forward.1} parent=1 // pred_check
      _
    $region3: #{gesture_classifier_forward.1} parent=1 // pred_check_branch
      %13 = sbr.rel (0) target = $region5
    $region4: #{gesture_classifier_forward.1} parent=1 // pred_region
      _
    $region5: #{gesture_classifier_forward.1} parent=1 // pred_fallthru
      _
    // Predicated region
    $region6: #{gesture_classifier_forward.1} parent=1 // pred_check
      _
    $region7: #{gesture_classifier_forward.1} parent=1 // pred_check_branch
      %15 = sbr.rel (0) target = $region9
    $region8: #{gesture_classifier_forward.1} parent=1 // pred_region
      %s17 = ssub.s32 512, 512
      %18 = vsyncadd [#allocation3], %s17
      %s19 = sshll.u32 [#allocation2], 4
      %s20 = int_to_ptr.vmem [resolvable:$true] %s19
      %25 = dma.hbm_to_vmem [thread:$0]  %s1, 512, %s20, [#allocation3], 128, 128, 8
    $region9: #{gesture_classifier_forward.1} parent=1 // pred_fallthru
      _
    // Predicated region
    $region10: #{gesture_classifier_forward.1} parent=1 // pred_check
      _
    $region11: #{gesture_classifier_forward.1} parent=1 // pred_check_branch
      %27 = sbr.rel (0) target = $region13
    $region12: #{gesture_classifier_forward.1} parent=1 // pred_region
      _
    $region13: #{gesture_classifier_forward.1} parent=1 // pred_fallthru
      _
    // Predicated region
    $region14: #{gesture_classifier_forward.1} parent=1 // pred_check
      _
    $region15: #{gesture_classifier_forward.1} parent=1 // pred_check_branch
      %29 = sbr.rel (0) target = $region17
    $region16: #{gesture_classifier_forward.1} parent=1 // pred_region
      %s31 = ssub.s32 2048, 2048
      %32 = vsyncadd [#allocation5], %s31
      %s33 = sshll.u32 [#allocation4], 4
      %s34 = int_to_ptr.vmem [resolvable:$true] %s33
      %39 = dma.hbm_to_vmem [thread:$0]  %s3, 2048, %s34, [#allocation5], 64, 64, 4
    $region17: #{gesture_classifier_forward.1} parent=1 // pred_fallthru
      _
    // Predicated region
    $region18: #{gesture_classifier_forward.1} parent=1 // pred_check
      _
    $region19: #{gesture_classifier_forward.1} parent=1 // pred_check_branch
      %41 = sbr.rel (0) target = $region21
    $region20: #{gesture_classifier_forward.1} parent=1 // pred_region
      _
    $region21: #{gesture_classifier_forward.1} parent=1 // pred_fallthru
      _
    // Predicated region
    $region22: #{gesture_classifier_forward.1} parent=1 // pred_check
      _
    $region23: #{gesture_classifier_forward.1} parent=1 // pred_check_branch
      %43 = sbr.rel (0) target = $region25
    $region24: #{gesture_classifier_forward.1} parent=1 // pred_region
      %44 = dma.done [#allocation3], 512
    $region25: #{gesture_classifier_forward.1} parent=1 // pred_fallthru
      _
    // Predicated region
    $region26: #{gesture_classifier_forward.1} parent=1 // pred_check
      _
    $region27: #{gesture_classifier_forward.1} parent=1 // pred_check_branch
      %46 = sbr.rel (0) target = $region29
    $region28: #{gesture_classifier_forward.1} parent=1 // pred_region
      %47 = dma.done [#allocation5], 2048
    $region29: #{gesture_classifier_forward.1} parent=1 // pred_fallthru
      _
    %v49 = vld [vmem:[%s0] sm:$0xff]
    %v50 = vld [vmem:[%s0 + $0x8] sm:$0xff]
    %v51 = vpack.c.bf16 %v50, %v49
    %v52 = vld [vmem:[#allocation2] sm:$0xff]
    %v53 = vld [vmem:[#allocation2 + $0x8] sm:$0xff]
    %v54 = vld [vmem:[#allocation2 + $0x10] sm:$0xff]
    %v55 = vld [vmem:[#allocation2 + $0x18] sm:$0xff]
    %v56 = vld [vmem:[%s2] sm:$0x3]
    %v58 = vlaneseq
    %v59 = vshrl.u32 %v58, 7
    %v60 = vsub.s32 0, %v59
    %v61 = vrot.slane %v56, %v60
    %v62 = vlaneseq
    %v63 = vshrl.u32 %v62, 7
    %v64 = vsub.s32 1, %v63
    %v65 = vrot.slane %v56, %v64
    %v72 = vunpack.c.l.b16 %v52
    %v73 = vunpack.c.h.b16 %v52
    %v74 = vunpack.c.l.b16 %v53
    %v75 = vunpack.c.h.b16 %v53
    %v76 = vunpack.c.l.b16 %v54
    %v77 = vunpack.c.h.b16 %v54
    %v78 = vunpack.c.l.b16 %v55
    %v79 = vunpack.c.h.b16 %v55
    %v80 = vpack.c.b16 %v74, %v72
    %v81 = vpack.c.b16 %v75, %v73
    %v82 = vpack.c.b16 %v78, %v76
    %v83 = vpack.c.b16 %v79, %v77
    %vm88 = vcmask 261120
    %v90 = vsel %vm88, %v51, 0
    %92 = vmatprep.subr.bf16.mxu0 %v81
    %93 = vmatpush1.bf16.msra.mxu0 %v80
    %94 = vmatprep.subr.bf16.mxu0 %v83
    %95 = vmatpush1.bf16.msra.mxu0 %v82
    %96 = vmatprep.subr.bf16.mxu0 0
    %97 = vmatpush1.bf16.msra.mxu0 0
    %98 = vmatprep.subr.bf16.mxu0 0
    %99 = vmatpush1.bf16.msra.mxu0 0
    %100 = vmatprep.subr.bf16.mxu0 0
    %101 = vmatpush1.bf16.msra.mxu0 0
    %102 = vmatprep.subr.bf16.mxu0 0
    %103 = vmatpush1.bf16.msra.mxu0 0
    %104 = vmatprep.subr.bf16.mxu0 0
    %105 = vmatpush1.bf16.msra.mxu0 0
    %106 = vmatprep.subr.bf16.mxu0 0
    %107 = vmatpush1.bf16.msra.mxu0 0
    %108 = vmatprep.subr.bf16.mxu0 0
    %109 = vmatpush1.bf16.msra.mxu0 0
    %110 = vmatprep.subr.bf16.mxu0 0
    %111 = vmatpush1.bf16.msra.mxu0 0
    %112 = vmatprep.subr.bf16.mxu0 0
    %113 = vmatpush1.bf16.msra.mxu0 0
    %114 = vmatprep.subr.bf16.mxu0 0
    %115 = vmatpush1.bf16.msra.mxu0 0
    %116 = vmatprep.subr.bf16.mxu0 0
    %117 = vmatpush1.bf16.msra.mxu0 0
    %118 = vmatprep.subr.bf16.mxu0 0
    %119 = vmatpush1.bf16.msra.mxu0 0
    %120 = vmatprep.subr.bf16.mxu0 0
    %121 = vmatpush1.bf16.msra.mxu0 0
    %122 = vmatprep.subr.bf16.mxu0 0
    %123 = vmatpush1.bf16.msra.mxu0 0
    %124 = vmatprep.mubr.bf16.mxu0 0
    %125 = vmatmul.mubr.bf16.gmra.mrb[0].mxu0 %v90
    %v126 = vpop.f32.mrb[0].mxu0
    %v127 = vadd.f32 %v61, %v126
    %v128 = vpop.f32.mrb[0].mxu0
    %v129 = vadd.f32 %v65, %v128
    %v130 = vpop.f32.mrb[0].mxu0
    %v131 = vadd.f32 %v61, %v130
    %v132 = vpop.f32.mrb[0].mxu0
    %v133 = vadd.f32 %v65, %v132
    %134 = vdwg.mxu0
    %v135 = vmax.f32 %v127, 0.0
    %v136 = vmax.f32 %v129, 0.0
    %v137 = vmax.f32 %v131, 0.0
    %v138 = vmax.f32 %v133, 0.0
    %v139 = vpack.c.bf16 %v137, %v135
    %v140 = vpack.c.bf16 %v138, %v136
    %v141 = vld [vmem:[#allocation4] sm:$0xf]
    %v142 = vld [vmem:[#allocation4 + $0x4] sm:$0xf]
    %v143 = vld [vmem:[#allocation4 + $0x8] sm:$0xf]
    %v144 = vld [vmem:[#allocation4 + $0xc] sm:$0xf]
    %v145 = vld [vmem:[#allocation4 + $0x10] sm:$0xf]
    %v146 = vld [vmem:[#allocation4 + $0x14] sm:$0xf]
    %v147 = vld [vmem:[#allocation4 + $0x18] sm:$0xf]
    %v148 = vld [vmem:[#allocation4 + $0x1c] sm:$0xf]
    %v149 = vld [vmem:[#allocation4 + $0x20] sm:$0xf]
    %v150 = vld [vmem:[#allocation4 + $0x24] sm:$0xf]
    %v151 = vld [vmem:[#allocation4 + $0x28] sm:$0xf]
    %v152 = vld [vmem:[#allocation4 + $0x2c] sm:$0xf]
    %v153 = vld [vmem:[#allocation4 + $0x30] sm:$0xf]
    %v154 = vld [vmem:[#allocation4 + $0x34] sm:$0xf]
    %v155 = vld [vmem:[#allocation4 + $0x38] sm:$0xf]
    %v156 = vld [vmem:[#allocation4 + $0x3c] sm:$0xf]
    %v157 = vld [vmem:[#allocation4 + $0x40] sm:$0xf]
    %v158 = vld [vmem:[#allocation4 + $0x44] sm:$0xf]
    %v159 = vld [vmem:[#allocation4 + $0x48] sm:$0xf]
    %v160 = vld [vmem:[#allocation4 + $0x4c] sm:$0xf]
    %v161 = vld [vmem:[#allocation4 + $0x50] sm:$0xf]
    %v162 = vld [vmem:[#allocation4 + $0x54] sm:$0xf]
    %v163 = vld [vmem:[#allocation4 + $0x58] sm:$0xf]
    %v164 = vld [vmem:[#allocation4 + $0x5c] sm:$0xf]
    %v165 = vld [vmem:[#allocation4 + $0x60] sm:$0xf]
    %v166 = vld [vmem:[#allocation4 + $0x64] sm:$0xf]
    %v167 = vld [vmem:[#allocation4 + $0x68] sm:$0xf]
    %v168 = vld [vmem:[#allocation4 + $0x6c] sm:$0xf]
    %v169 = vld [vmem:[#allocation4 + $0x70] sm:$0xf]
    %v170 = vld [vmem:[#allocation4 + $0x74] sm:$0xf]
    %v171 = vld [vmem:[#allocation4 + $0x78] sm:$0xf]
    %v172 = vld [vmem:[#allocation4 + $0x7c] sm:$0xf]
    %v173 = vld [vmem:[%s4] sm:$0x1]
    %v175 = vlaneseq
    %v176 = vshrl.u32 %v175, 7
    %v177 = vsub.s32 0, %v176
    %v178 = vrot.slane %v173, %v177
    %v212 = vunpack.c.l.b16 %v141
    %v213 = vunpack.c.l.b16 %v142
    %v214 = vunpack.c.l.b16 %v143
    %v215 = vunpack.c.l.b16 %v144
    %v216 = vunpack.c.l.b16 %v145
    %v217 = vunpack.c.l.b16 %v146
    %v218 = vunpack.c.l.b16 %v147
    %v219 = vunpack.c.l.b16 %v148
    %v220 = vunpack.c.l.b16 %v149
    %v221 = vunpack.c.l.b16 %v150
    %v222 = vunpack.c.l.b16 %v151
    %v223 = vunpack.c.l.b16 %v152
    %v224 = vunpack.c.l.b16 %v153
    %v225 = vunpack.c.l.b16 %v154
    %v226 = vunpack.c.l.b16 %v155
    %v227 = vunpack.c.l.b16 %v156
    %v228 = vunpack.c.l.b16 %v157
    %v229 = vunpack.c.l.b16 %v158
    %v230 = vunpack.c.l.b16 %v159
    %v231 = vunpack.c.l.b16 %v160
    %v232 = vunpack.c.l.b16 %v161
    %v233 = vunpack.c.l.b16 %v162
    %v234 = vunpack.c.l.b16 %v163
    %v235 = vunpack.c.l.b16 %v164
    %v236 = vunpack.c.l.b16 %v165
    %v237 = vunpack.c.l.b16 %v166
    %v238 = vunpack.c.l.b16 %v167
    %v239 = vunpack.c.l.b16 %v168
    %v240 = vunpack.c.l.b16 %v169
    %v241 = vunpack.c.l.b16 %v170
    %v242 = vunpack.c.l.b16 %v171
    %v243 = vunpack.c.l.b16 %v172
    %v244 = vpack.c.b16 %v213, %v212
    %v245 = vpack.c.b16 %v215, %v214
    %v246 = vpack.c.b16 %v217, %v216
    %v247 = vpack.c.b16 %v219, %v218
    %v248 = vpack.c.b16 %v221, %v220
    %v249 = vpack.c.b16 %v223, %v222
    %v250 = vpack.c.b16 %v225, %v224
    %v251 = vpack.c.b16 %v227, %v226
    %v252 = vpack.c.b16 %v229, %v228
    %v253 = vpack.c.b16 %v231, %v230
    %v254 = vpack.c.b16 %v233, %v232
    %v255 = vpack.c.b16 %v235, %v234
    %v256 = vpack.c.b16 %v237, %v236
    %v257 = vpack.c.b16 %v239, %v238
    %v258 = vpack.c.b16 %v241, %v240
    %v259 = vpack.c.b16 %v243, %v242
    %276 = vmatprep.subr.bf16.mxu0 0
    %277 = vmatpush1.bf16.msra.mxu0 %v244
    %278 = vmatprep.subr.bf16.mxu0 0
    %279 = vmatpush1.bf16.msra.mxu0 %v245
    %280 = vmatprep.subr.bf16.mxu0 0
    %281 = vmatpush1.bf16.msra.mxu0 %v246
    %282 = vmatprep.subr.bf16.mxu0 0
    %283 = vmatpush1.bf16.msra.mxu0 %v247
    %284 = vmatprep.subr.bf16.mxu0 0
    %285 = vmatpush1.bf16.msra.mxu0 %v248
    %286 = vmatprep.subr.bf16.mxu0 0
    %287 = vmatpush1.bf16.msra.mxu0 %v249
    %288 = vmatprep.subr.bf16.mxu0 0
    %289 = vmatpush1.bf16.msra.mxu0 %v250
    %290 = vmatprep.subr.bf16.mxu0 0
    %291 = vmatpush1.bf16.msra.mxu0 %v251
    %292 = vmatprep.subr.bf16.mxu0 0
    %293 = vmatpush1.bf16.msra.mxu0 %v252
    %294 = vmatprep.subr.bf16.mxu0 0
    %295 = vmatpush1.bf16.msra.mxu0 %v253
    %296 = vmatprep.subr.bf16.mxu0 0
    %297 = vmatpush1.bf16.msra.mxu0 %v254
    %298 = vmatprep.subr.bf16.mxu0 0
    %299 = vmatpush1.bf16.msra.mxu0 %v255
    %300 = vmatprep.subr.bf16.mxu0 0
    %301 = vmatpush1.bf16.msra.mxu0 %v256
    %302 = vmatprep.subr.bf16.mxu0 0
    %303 = vmatpush1.bf16.msra.mxu0 %v257
    %304 = vmatprep.subr.bf16.mxu0 0
    %305 = vmatpush1.bf16.msra.mxu0 %v258
    %306 = vmatprep.subr.bf16.mxu0 0
    %307 = vmatpush1.bf16.msra.mxu0 %v259
    %308 = vmatprep.mubr.bf16.mxu0 %v140
    %309 = vmatmul.mubr.bf16.gmra.mrb[0].mxu0 %v139
    %v310 = vpop.f32.mrb[0].mxu0
    %v311 = vadd.f32 %v178, %v310
    %v312 = vpop.f32.mrb[0].mxu0
    %v313 = vpop.f32.mrb[0].mxu0
    %v314 = vadd.f32 %v178, %v313
    %v315 = vpop.f32.mrb[0].mxu0
    %316 = vdwg.mxu0
    %317 = vst [vmem:[%s5] sm:$0xff] %v311
    %318 = vst [vmem:[%s5 + $0x8] sm:$0xff] %v314
    // Predicated region
    $region30: #{gesture_classifier_forward.1} parent=1 // pred_check
      _
    $region31: #{gesture_classifier_forward.1} parent=1 // pred_check_branch
      %320 = sbr.rel (0) target = $region33
    $region32: #{gesture_classifier_forward.1} parent=1 // pred_region
      _
    $region33: #{gesture_classifier_forward.1} parent=1 // pred_fallthru
      _
    // Predicated region
    $region34: #{gesture_classifier_forward.1} parent=1 // pred_check
      _
    $region35: #{gesture_classifier_forward.1} parent=1 // pred_check_branch
      %322 = sbr.rel (0) target = $region37
    $region36: #{gesture_classifier_forward.1} parent=1 // pred_region
      _
    $region37: #{gesture_classifier_forward.1} parent=1 // pred_fallthru
      _
    %323 = vsyncpa [#allocation3], 1
    %324 = vsyncpa [#allocation5], 1

</llo_original>
